<compile_context>
chip_gen: v6e
topology: v6e:2x2x1
jax: 0.10.0
libtpu: 0.0.40
codegen_flags: <defaults>
</compile_context>

<pallas_src>
import functools

import jax
import jax.numpy as jnp
from jax.experimental import pallas as pl
from jax.experimental.pallas import tpu as pltpu


def _round_up(x, m):
    return ((x + m - 1) // m) * m


def _cdiv(a, b):
    return (a + b - 1) // b


def _vmem_budget_bytes():
    """Per-generation VMEM budget: capacity minus compiler-scratch headroom."""
    try:
        cap = int(pltpu.get_tpu_info().vmem_capacity_bytes)
    except Exception:
        cap = 64 << 20  # conservative fallback (v7x per-TC)
    return max(cap - (10 << 20), 16 << 20)


def _choose_tm(n_tokens, hint):
    """Token tile: multiple of 8, >=2 tiles when possible (megacore), sized to
    balance tiles so tail padding stays small."""
    hint = max(8, _round_up(hint, 8))
    if n_tokens <= 8:
        return 8
    n_tiles = max(2, _cdiv(n_tokens, hint))
    return _round_up(_cdiv(n_tokens, n_tiles), 8)


# ----------------------------------------------------------------------------
# Kernels
# ----------------------------------------------------------------------------
def _resident_kernel(x_ref, w1_ref, b1_ref, w2_ref, b2_ref, o_ref, acc_ref,
                     *, n_chunks, gelu_approximate, compute_dtype):
    # x_ref : (tm, Dp)           w1_ref: (nc, Dp, th)    b1_ref: (nc, 1, th)
    # w2_ref: (nc, th, Dp)       b2_ref: (1, Dp)         o_ref : (tm, Dp)
    # acc_ref: (tm, Dp) f32 scratch accumulator.
    xw = x_ref[...].astype(w1_ref.dtype)

    def ff_chunk(c):
        h = jnp.dot(xw, w1_ref[c], preferred_element_type=jnp.float32)
        h = h.astype(compute_dtype) + b1_ref[c].astype(compute_dtype)
        h = jax.nn.gelu(h, approximate=gelu_approximate)
        return jnp.dot(h.astype(w2_ref.dtype), w2_ref[c],
                       preferred_element_type=jnp.float32)

    # Accumulator init folded into the first chunk (saves one f32 RMW pass).
    acc_ref[...] = ff_chunk(0)

    if n_chunks > 1:
        @pl.loop(1, n_chunks)
        def _(c):
            acc_ref[...] += ff_chunk(c)

    # Re-read x for the residual (cheap vld; keeps vreg pressure low above).
    y = (acc_ref[...] + b2_ref[...].astype(jnp.float32)
         + x_ref[...].astype(jnp.float32))
    o_ref[...] = y.astype(o_ref.dtype)


def _streaming_kernel(x_ref, w1_ref, b1_ref, w2_ref, b2_ref, o_ref, acc_ref,
                      *, gelu_approximate, compute_dtype):
    # Grid = (token tiles, H chunks); weights stream chunk-by-chunk from HBM.
    k = pl.program_id(1)

    xw = x_ref[...].astype(w1_ref.dtype)
    h = jnp.dot(xw, w1_ref[...], preferred_element_type=jnp.float32)
    h = h.astype(compute_dtype) + b1_ref[...].astype(compute_dtype)
    h = jax.nn.gelu(h, approximate=gelu_approximate)
    part = jnp.dot(h.astype(w2_ref.dtype), w2_ref[...],
                   preferred_element_type=jnp.float32)

    @pl.when(k == 0)
    def _init():
        acc_ref[...] = part

    @pl.when(k > 0)
    def _accum():
        acc_ref[...] += part

    @pl.when(k == pl.num_programs(1) - 1)
    def _finalize():
        y = (acc_ref[...] + b2_ref[...].astype(jnp.float32)
             + x_ref[...].astype(jnp.float32))
        o_ref[...] = y.astype(o_ref.dtype)


# ----------------------------------------------------------------------------
# Wrapper
# ----------------------------------------------------------------------------
def residual_add_feedforward(x, w1, b1, w2, b2, *, tm=256, th=512,
                             gelu_approximate=True):
    """out = GELU(x @ w1 + b1) @ w2 + b2 + x, fused in a single Pallas kernel.

    x: [B, S, D].  Weights may be f32 or bf16; accumulation stays f32.
    gelu_approximate=True uses the tanh form (EUP-friendly); pass False for
    erf parity with torch.nn.GELU.
    """
    B, S, D = x.shape
    H = w1.shape[1]
    N = B * S

    w_dt = jnp.dtype(w1.dtype)
    x_dt = jnp.dtype(x.dtype)
    w_sz = w_dt.itemsize
    x_sz = x_dt.itemsize
    # bf16 bias/GELU chain only where it pays (bf16 VALU/EUP); tied to the
    # weight dtype so f32 models keep a full-precision elementwise path.
    compute_dtype = (jnp.bfloat16 if w_dt == jnp.dtype(jnp.bfloat16)
                     else jnp.float32)

    D_pad = _round_up(D, 128)        # lane-dense (unmasked vst) output stores
    H_pad = _round_up(H, 128)
    budget = _vmem_budget_bytes()

    # ----------------------- resident-weights plan ------------------------
    tm_r = _choose_tm(N, tm)
    th_r = next(t for t in (512, 256, 128) if H_pad % t == 0)
    n_chunks = H_pad // th_r

    def _resident_bytes(tm_, th_, nc):
        wb = (nc * (2 * D_pad * th_ + 8 * th_) + 8 * D_pad) * w_sz
        wb *= 2                                   # BlockSpec double-buffers
        io = 2 * 2 * tm_ * D_pad * x_sz           # x + out tiles, dbl-buffered
        acc = tm_ * D_pad * 4
        inter = 2 * tm_ * th_ * 4                 # GELU intermediate + slack
        return wb + io + acc + inter + (2 << 20)

    if _resident_bytes(tm_r, th_r, n_chunks) <= budget:
        N_pad = _cdiv(N, tm_r) * tm_r

        x2 = x.reshape(N, D)
        if (N_pad, D_pad) != (N, D):
            x2 = jnp.zeros((N_pad, D_pad), x_dt).at[:N, :D].set(x2)

        # NOTE: weights are static in a real model — pad/chunk once outside
        # the hot path instead of per call.
        w1p = w1 if (D, H) == (D_pad, H_pad) else \
            jnp.zeros((D_pad, H_pad), w1.dtype).at[:D, :H].set(w1)
        b1p = b1 if H == H_pad else \
            jnp.zeros((H_pad,), b1.dtype).at[:H].set(b1)
        w2p = w2 if (H, D) == (H_pad, D_pad) else \
            jnp.zeros((H_pad, D_pad), w2.dtype).at[:H, :D].set(w2)
        b2p = b2 if D == D_pad else \
            jnp.zeros((D_pad,), b2.dtype).at[:D].set(b2)

        w1c = w1p.reshape(D_pad, n_chunks, th_r).transpose(1, 0, 2)
        b1c = b1p.reshape(n_chunks, 1, th_r)
        w2c = w2p.reshape(n_chunks, th_r, D_pad)
        b2c = b2p.reshape(1, D_pad)

        est = _resident_bytes(tm_r, th_r, n_chunks)
        vmem_limit = int(min(budget, max(est + (4 << 20), 32 << 20)))

        kernel = functools.partial(
            _resident_kernel, n_chunks=n_chunks,
            gelu_approximate=gelu_approximate, compute_dtype=compute_dtype)

        out2 = pl.pallas_call(
            kernel,
            out_shape=jax.ShapeDtypeStruct((N_pad, D_pad), x_dt),
            grid_spec=pltpu.PrefetchScalarGridSpec(
                num_scalar_prefetch=0,
                grid=(N_pad // tm_r,),
                in_specs=[
                    pl.BlockSpec((tm_r, D_pad), lambda i: (i, 0)),     # x tile
                    # Constant index maps: weight slabs are DMA'd into VMEM
                    # once and reused by every token tile.
                    pl.BlockSpec((n_chunks, D_pad, th_r),
                                 lambda i: (0, 0, 0)),                 # w1
                    pl.BlockSpec((n_chunks, 1, th_r),
                                 lambda i: (0, 0, 0)),                 # b1
                    pl.BlockSpec((n_chunks, th_r, D_pad),
                                 lambda i: (0, 0, 0)),                 # w2
                    pl.BlockSpec((1, D_pad), lambda i: (0, 0)),        # b2
                ],
                out_specs=pl.BlockSpec((tm_r, D_pad), lambda i: (i, 0)),
                scratch_shapes=[pltpu.VMEM((tm_r, D_pad), jnp.float32)],
            ),
            compiler_params=pltpu.CompilerParams(
                dimension_semantics=("parallel",),
                vmem_limit_bytes=vmem_limit,
            ),
        )(x2, w1c, b1c, w2c, b2c)

        return out2[:N, :D].reshape(B, S, D)

    # --------------------- streaming fallback (big H/D) -------------------
    tm_s = _choose_tm(N, max(tm, 512))   # bigger token tile amortizes weights
    th_s = min(max(_round_up(th, 128), 128), H_pad)

    def _streaming_bytes(tm_, th_):
        wb = 2 * (2 * D_pad * th_ + 8 * th_ + 8 * D_pad) * w_sz
        io = 2 * 2 * tm_ * D_pad * x_sz
        acc = tm_ * D_pad * 4
        inter = 2 * tm_ * th_ * 4
        return wb + io + acc + inter + (2 << 20)

    while th_s > 128 and _streaming_bytes(tm_s, th_s) > budget:
        th_s -= 128
    while tm_s > 8 and _streaming_bytes(tm_s, th_s) > budget:
        tm_s = max(8, _round_up(tm_s // 2, 8))

    N_pad = _cdiv(N, tm_s) * tm_s
    H_pad_s = _round_up(H, th_s)

    x2 = x.reshape(N, D)
    if (N_pad, D_pad) != (N, D):
        x2 = jnp.zeros((N_pad, D_pad), x_dt).at[:N, :D].set(x2)
    w1p = w1 if (D, H) == (D_pad, H_pad_s) else \
        jnp.zeros((D_pad, H_pad_s), w1.dtype).at[:D, :H].set(w1)
    b1p = (b1 if H == H_pad_s else
           jnp.zeros((H_pad_s,), b1.dtype).at[:H].set(b1)).reshape(1, H_pad_s)
    w2p = w2 if (H, D) == (H_pad_s, D_pad) else \
        jnp.zeros((H_pad_s, D_pad), w2.dtype).at[:H, :D].set(w2)
    b2p = (b2 if D == D_pad else
           jnp.zeros((D_pad,), b2.dtype).at[:D].set(b2)).reshape(1, D_pad)

    est = _streaming_bytes(tm_s, th_s)
    vmem_limit = int(min(budget, max(est + (4 << 20), 32 << 20)))

    kernel = functools.partial(
        _streaming_kernel, gelu_approximate=gelu_approximate,
        compute_dtype=compute_dtype)

    out2 = pl.pallas_call(
        kernel,
        out_shape=jax.ShapeDtypeStruct((N_pad, D_pad), x_dt),
        grid_spec=pltpu.PrefetchScalarGridSpec(
            num_scalar_prefetch=0,
            grid=(N_pad // tm_s, H_pad_s // th_s),
            in_specs=[
                pl.BlockSpec((tm_s, D_pad), lambda i, k: (i, 0)),   # x tile
                pl.BlockSpec((D_pad, th_s), lambda i, k: (0, k)),   # w1 chunk
                pl.BlockSpec((1, th_s), lambda i, k: (0, k)),       # b1 chunk
                pl.BlockSpec((th_s, D_pad), lambda i, k: (k, 0)),   # w2 chunk
                pl.BlockSpec((1, D_pad), lambda i, k: (0, 0)),      # b2
            ],
            out_specs=pl.BlockSpec((tm_s, D_pad), lambda i, k: (i, 0)),
            scratch_shapes=[pltpu.VMEM((tm_s, D_pad), jnp.float32)],
        ),
        compiler_params=pltpu.CompilerParams(
            dimension_semantics=("parallel", "arbitrary"),
            vmem_limit_bytes=vmem_limit,
        ),
    )(x2, w1p, b1p, w2p, b2p)

    return out2[:N, :D].reshape(B, S, D)


# ----------------------------------------------------------------------------
# Reference + test
# ----------------------------------------------------------------------------
def _reference(x, w1, b1, w2, b2, *, gelu_approximate=True):
    xf = x.astype(jnp.float32)
    h = jax.nn.gelu(xf @ w1.astype(jnp.float32) + b1.astype(jnp.float32),
                    approximate=gelu_approximate)
    y = h @ w2.astype(jnp.float32) + b2.astype(jnp.float32)
    return (y + xf).astype(x.dtype)


if __name__ == "__main__":
    B, S, D, H = 2, 8, 32, 128

    key = jax.random.PRNGKey(0)
    kx, k1, k2, k3, k4 = jax.random.split(key, 5)

    x = jax.random.normal(kx, (B, S, D), dtype=jnp.float32)
    w1 = jax.random.normal(k1, (D, H), dtype=jnp.float32) * 0.05
    b1 = jax.random.normal(k2, (H,), dtype=jnp.float32) * 0.01
    w2 = jax.random.normal(k3, (H, D), dtype=jnp.float32) * 0.05
    b2 = jax.random.normal(k4, (D,), dtype=jnp.float32) * 0.01

    out = residual_add_feedforward(x, w1, b1, w2, b2, gelu_approximate=True)
    out = jax.block_until_ready(out)

    ref = _reference(x, w1, b1, w2, b2, gelu_approximate=True)
    assert out.shape == x.shape and out.dtype == x.dtype
    assert jnp.allclose(out, ref, atol=1e-4, rtol=1e-4)

    print("KERNEL_OK")
</pallas_src>

<mosaic_0001>
module attributes {stable_mosaic.version = 11 : i64} {
  func.func @_resident_kernel(%arg0: i32, %arg1: memref<8x128xf32, #tpu.memory_space<vmem>>, %arg2: memref<1x128x128xf32, #tpu.memory_space<vmem>>, %arg3: memref<1x1x128xf32, #tpu.memory_space<vmem>>, %arg4: memref<1x128x128xf32, #tpu.memory_space<vmem>>, %arg5: memref<1x128xf32, #tpu.memory_space<vmem>>, %arg6: memref<8x128xf32, #tpu.memory_space<vmem>>, %arg7: memref<8x128xf32, #tpu.memory_space<vmem>>) attributes {dimension_semantics = [#tpu.dimension_semantics<parallel>], iteration_bounds = array<i64: 2>, scalar_prefetch = 0 : i64, scratch_operands = 1 : i64, tpu.core_type = #tpu.core_type<tc>, window_params = [{transform_indices = @transform_0, window_bounds = array<i64: 8, 128>}, {pipeline_mode = #tpu.pipeline_mode<synchronous>, transform_indices = @transform_1, window_bounds = array<i64: 1, 128, 128>}, {pipeline_mode = #tpu.pipeline_mode<synchronous>, transform_indices = @transform_2, window_bounds = array<i64: 1, 1, 128>}, {pipeline_mode = #tpu.pipeline_mode<synchronous>, transform_indices = @transform_3, window_bounds = array<i64: 1, 128, 128>}, {pipeline_mode = #tpu.pipeline_mode<synchronous>, transform_indices = @transform_4, window_bounds = array<i64: 1, 128>}, {transform_indices = @transform_5, window_bounds = array<i64: 8, 128>}]} {
    %c0 = arith.constant 0 : index
    %c0_0 = arith.constant 0 : index
    %0 = vector.load %arg1[%c0, %c0_0] : memref<8x128xf32, #tpu.memory_space<vmem>>, vector<8x128xf32>
    %c0_1 = arith.constant 0 : index
    %c0_2 = arith.constant 0 : index
    %c0_3 = arith.constant 0 : index
    %1 = vector.load %arg2[%c0_1, %c0_2, %c0_3] : memref<1x128x128xf32, #tpu.memory_space<vmem>>, vector<1x128x128xf32>
    %2 = vector.shape_cast %1 : vector<1x128x128xf32> to vector<128x128xf32>
    %cst = arith.constant dense<0.000000e+00> : vector<8x128xf32>
    %3 = tpu.matmul %0, %2, %cst {dimension_numbers = #tpu.dot_dimension_numbers<[1], [0], [0], [1], [0, 0, 1, 1], [], []>} : vector<8x128xf32>, vector<128x128xf32>, vector<8x128xf32> -> vector<8x128xf32>
    %c0_4 = arith.constant 0 : index
    %c0_5 = arith.constant 0 : index
    %c0_6 = arith.constant 0 : index
    %4 = vector.load %arg3[%c0_4, %c0_5, %c0_6] : memref<1x1x128xf32, #tpu.memory_space<vmem>>, vector<1x1x128xf32>
    %5 = vector.shape_cast %4 : vector<1x1x128xf32> to vector<1x128xf32>
    %6 = vector.broadcast %5 : vector<1x128xf32> to vector<8x128xf32>
    %7 = arith.addf %3, %6 : vector<8x128xf32>
    %8 = arith.mulf %7, %7 : vector<8x128xf32>
    %9 = arith.mulf %7, %8 : vector<8x128xf32>
    %cst_7 = arith.constant 4.471500e-02 : f32
    %10 = vector.broadcast %cst_7 : f32 to vector<8x128xf32>
    %11 = arith.mulf %10, %9 : vector<8x128xf32>
    %12 = arith.addf %7, %11 : vector<8x128xf32>
    %cst_8 = arith.constant 0.797884583 : f32
    %13 = vector.broadcast %cst_8 : f32 to vector<8x128xf32>
    %14 = arith.mulf %13, %12 : vector<8x128xf32>
    %15 = math.tanh %14 : vector<8x128xf32>
    %cst_9 = arith.constant 1.000000e+00 : f32
    %16 = vector.broadcast %cst_9 : f32 to vector<8x128xf32>
    %17 = arith.addf %16, %15 : vector<8x128xf32>
    %cst_10 = arith.constant 5.000000e-01 : f32
    %18 = vector.broadcast %cst_10 : f32 to vector<8x128xf32>
    %19 = arith.mulf %18, %17 : vector<8x128xf32>
    %20 = arith.mulf %7, %19 : vector<8x128xf32>
    %c0_11 = arith.constant 0 : index
    %c0_12 = arith.constant 0 : index
    %c0_13 = arith.constant 0 : index
    %21 = vector.load %arg4[%c0_11, %c0_12, %c0_13] : memref<1x128x128xf32, #tpu.memory_space<vmem>>, vector<1x128x128xf32>
    %22 = vector.shape_cast %21 : vector<1x128x128xf32> to vector<128x128xf32>
    %cst_14 = arith.constant dense<0.000000e+00> : vector<8x128xf32>
    %23 = tpu.matmul %20, %22, %cst_14 {dimension_numbers = #tpu.dot_dimension_numbers<[1], [0], [0], [1], [0, 0, 1, 1], [], []>} : vector<8x128xf32>, vector<128x128xf32>, vector<8x128xf32> -> vector<8x128xf32>
    %c0_15 = arith.constant 0 : index
    %c0_16 = arith.constant 0 : index
    %24 = vector.load %arg7[%c0_15, %c0_16] : memref<8x128xf32, #tpu.memory_space<vmem>>, vector<8x128xf32>
    tpu.vector_store %arg7[%c0_15, %c0_16], %23 {strides = array<i32>} : memref<8x128xf32, #tpu.memory_space<vmem>>, vector<8x128xf32>,
    %c0_17 = arith.constant 0 : index
    %c0_18 = arith.constant 0 : index
    %25 = vector.load %arg7[%c0_17, %c0_18] : memref<8x128xf32, #tpu.memory_space<vmem>>, vector<8x128xf32>
    %c0_19 = arith.constant 0 : index
    %c0_20 = arith.constant 0 : index
    %26 = vector.load %arg5[%c0_19, %c0_20] : memref<1x128xf32, #tpu.memory_space<vmem>>, vector<1x128xf32>
    %27 = vector.broadcast %26 : vector<1x128xf32> to vector<8x128xf32>
    %28 = arith.addf %25, %27 : vector<8x128xf32>
    %c0_21 = arith.constant 0 : index
    %c0_22 = arith.constant 0 : index
    %29 = vector.load %arg1[%c0_21, %c0_22] : memref<8x128xf32, #tpu.memory_space<vmem>>, vector<8x128xf32>
    %30 = arith.addf %28, %29 : vector<8x128xf32>
    %c0_23 = arith.constant 0 : index
    %c0_24 = arith.constant 0 : index
    %31 = vector.load %arg6[%c0_23, %c0_24] : memref<8x128xf32, #tpu.memory_space<vmem>>, vector<8x128xf32>
    tpu.vector_store %arg6[%c0_23, %c0_24], %30 {strides = array<i32>} : memref<8x128xf32, #tpu.memory_space<vmem>>, vector<8x128xf32>,
    return
  }
  func.func @transform_0(%arg0: i32) -> (i32, i32) {
    %c0_i32 = arith.constant 0 : i32
    %c0_i32_0 = arith.constant 0 : i32
    return %arg0, %c0_i32 : i32, i32
  }
  func.func @transform_1(%arg0: i32) -> (i32, i32, i32) {
    %c0_i32 = arith.constant 0 : i32
    %c0_i32_0 = arith.constant 0 : i32
    %c0_i32_1 = arith.constant 0 : i32
    %c0_i32_2 = arith.constant 0 : i32
    return %c0_i32, %c0_i32_0, %c0_i32_1 : i32, i32, i32
  }
  func.func @transform_2(%arg0: i32) -> (i32, i32, i32) {
    %c0_i32 = arith.constant 0 : i32
    %c0_i32_0 = arith.constant 0 : i32
    %c0_i32_1 = arith.constant 0 : i32
    %c0_i32_2 = arith.constant 0 : i32
    return %c0_i32, %c0_i32_0, %c0_i32_1 : i32, i32, i32
  }
  func.func @transform_3(%arg0: i32) -> (i32, i32, i32) {
    %c0_i32 = arith.constant 0 : i32
    %c0_i32_0 = arith.constant 0 : i32
    %c0_i32_1 = arith.constant 0 : i32
    %c0_i32_2 = arith.constant 0 : i32
    return %c0_i32, %c0_i32_0, %c0_i32_1 : i32, i32, i32
  }
  func.func @transform_4(%arg0: i32) -> (i32, i32) {
    %c0_i32 = arith.constant 0 : i32
    %c0_i32_0 = arith.constant 0 : i32
    %c0_i32_1 = arith.constant 0 : i32
    return %c0_i32, %c0_i32_0 : i32, i32
  }
  func.func @transform_5(%arg0: i32) -> (i32, i32) {
    %c0_i32 = arith.constant 0 : i32
    %c0_i32_0 = arith.constant 0 : i32
    return %arg0, %c0_i32 : i32, i32
  }
}

</mosaic_0001>

<llo_original>
// kernel: tpu_custom_call.1
$region0: #{tpu_custom_call.1}
  #allocation0 [shape = 'u32[]', space=smem, size = 0x4, offset = 0x4, fixed_abs, tag = 'smem constant byte address 0x4 - core index']
  #allocation1 [shape = 'u32[144,128]{1,0:T(1,128)}', space=vmem, size = 0x12000, scoped, tag = 'internal scratch']
  #allocation2 [shape = 'f32[8,128]{1,0:T(8,128)}', space=vmem, size = 0x1000, scoped, tag = 'scratch operand']
  %s0 = inlined_call_operand.hbm [shape: f32[16,128], index: 0, kind: input, shape index: {}]
  %s1 = inlined_call_operand.hbm [shape: f32[1,128,128], index: 1, kind: input, shape index: {}]
  %s2 = inlined_call_operand.vmem [shape: f32[1,1,128], index: 2, kind: input, shape index: {}]
  %s3 = inlined_call_operand.hbm [shape: f32[1,128,128], index: 3, kind: input, shape index: {}]
  %s4 = inlined_call_operand.vmem [shape: f32[1,128], index: 4, kind: input, shape index: {}]
  %s5 = inlined_call_operand.hbm [shape: f32[16,128], index: 5, kind: output, shape index: {}]
  %s6 = sld [smem:[#allocation0]]
  $region65: #{tpu_custom_call.1} parent=0
    _
  %s8 = ssub.s32 1, %s6
  %s9 = scalar_select 0, %s8, %s6
  $region1: #{tpu_custom_call.1} parent=0
    #allocation3 [shape = 'u8[8192]{0}', space=vmem, size = 0x2000, scoped, tag = 'input window, operand 0']
    #allocation4 [shape = 's32[2]{0}', space=sflag, size = 0x8, scoped, tag = 'scoped memory for tpu_custom_call.1']
    #allocation5 [shape = 's32[2]{0}', space=sflag, size = 0x8, scoped, tag = 'scoped memory for tpu_custom_call.1']
    #allocation6 [shape = 'u8[65536]{0}', space=vmem, size = 0x10000, scoped, tag = 'input window, operand 1, single buffered']
    #allocation7 [shape = 's32[1]{0}', space=sflag, size = 0x4, scoped, tag = 'scoped memory for tpu_custom_call.1']
    #allocation8 [shape = 'u8[65536]{0}', space=vmem, size = 0x10000, scoped, tag = 'input window, operand 3, single buffered']
    #allocation9 [shape = 'u8[8192]{0}', space=vmem, size = 0x2000, scoped, tag = 'output window, operand 0']
    %10 = vsyncpa [#allocation4], 0
    %s11 = scalar_lea.sflag [#allocation4], 1
    %12 = vsyncpa %s11, 0
    %13 = vsyncpa [#allocation7], 0
    %14 = vsyncpa [#allocation5], 0
    %s15 = scalar_lea.sflag [#allocation5], 1
    %16 = vsyncpa %s15, 0
    loop: start=0, step=1, limit=4
    $region2: #{tpu_custom_call.1} parent=1 // loop_pre_header
      _
    $region3: #{tpu_custom_call.1} parent=1 // loop_header
      %s18 = sphi 0, %s22
      %p19 = scmp.ge.s32.totalorder %s18, 4
      %s28 = sphi 0, %s30
      %s31 = sphi 0, %s28
      %s32 = sphi 0, %s31
      %s48 = sphi 0, %s32
      %s52 = sphi 0, %s52
      %s54 = sphi 0, %s52
      %s55 = sphi 0, %s54
      %s69 = sphi 0, %s55
      %s73 = sphi 0, %s73
      %s75 = sphi 0, %s73
      %s76 = sphi 0, %s75
      %s90 = sphi 0, %s76
      %s94 = sphi 0, %s94
      %s96 = sphi 0, %s94
      %s97 = sphi 0, %s96
      %s111 = sphi 0, %s97
      %s115 = sphi 0, %s115
      %s117 = sphi 0, %s115
      %s118 = sphi 0, %s117
      %s132 = sphi 0, %s118
      %s138 = sphi 0, %s140
      %s141 = sphi 0, %s138
      %s142 = sphi 0, %s141
      %s158 = sphi 0, %s142
    $region4: #{tpu_custom_call.1} parent=1 // loop_header_branch
      %21 = sbr.rel (%p19) target = $region8
    $region5: #{tpu_custom_call.1} parent=1 // loop_body
      %s23 = ssub.s32 %s18, 1
      %s24 = ssub.s32 %s18, 2
      %s25 = sadd.s32 %s18, 1
      %s26 = ssub.s32 %s18, %s25
      %p27 = scmp.eq.s32.totalorder %s26, 0
      %s29 = sadd.s32 %s28, 1
      %s30 = scalar_select %p27, %s28, %s29
      %p33 = pneg %p27
      %p34 = scmp.eq.s32.totalorder %s18, 1
      %p35 = por %p33, %p34
      %p36 = scmp.ne.s32.totalorder %s28, %s31
      %p37 = scmp.eq.s32.totalorder %s18, 0
      %p38 = por %p36, %p37
      %p39 = scmp.ne.s32.totalorder %s28, %s31
      %p40 = scmp.eq.s32.totalorder %s23, 1
      %p41 = por %p39, %p40
      %p42 = scmp.ne.s32.totalorder %s31, %s32
      %p43 = scmp.eq.s32.totalorder %s23, 0
      %p44 = por %p42, %p43
      %p45 = scmp.ne.s32.totalorder %s31, %s32
      %p46 = scmp.eq.s32.totalorder %s24, 1
      %p47 = por %p45, %p46
      %p49 = scmp.ne.s32.totalorder %s32, %s48
      %p50 = scmp.eq.s32.totalorder %s24, 0
      %p51 = por %p49, %p50
      %s53 = sadd.s32 %s52, 1
      %p56 = scmp.eq.s32.totalorder %s18, 1
      %p57 = scmp.ne.s32.totalorder %s52, %s54
      %p58 = scmp.eq.s32.totalorder %s18, 0
      %p59 = por %p57, %p58
      %p60 = scmp.ne.s32.totalorder %s52, %s54
      %p61 = scmp.eq.s32.totalorder %s23, 1
      %p62 = por %p60, %p61
      %p63 = scmp.ne.s32.totalorder %s54, %s55
      %p64 = scmp.eq.s32.totalorder %s23, 0
      %p65 = por %p63, %p64
      %p66 = scmp.ne.s32.totalorder %s54, %s55
      %p67 = scmp.eq.s32.totalorder %s24, 1
      %p68 = por %p66, %p67
      %p70 = scmp.ne.s32.totalorder %s55, %s69
      %p71 = scmp.eq.s32.totalorder %s24, 0
      %p72 = por %p70, %p71
      %s74 = sadd.s32 %s73, 1
      %p77 = scmp.eq.s32.totalorder %s18, 1
      %p78 = scmp.ne.s32.totalorder %s73, %s75
      %p79 = scmp.eq.s32.totalorder %s18, 0
      %p80 = por %p78, %p79
      %p81 = scmp.ne.s32.totalorder %s73, %s75
      %p82 = scmp.eq.s32.totalorder %s23, 1
      %p83 = por %p81, %p82
      %p84 = scmp.ne.s32.totalorder %s75, %s76
      %p85 = scmp.eq.s32.totalorder %s23, 0
      %p86 = por %p84, %p85
      %p87 = scmp.ne.s32.totalorder %s75, %s76
      %p88 = scmp.eq.s32.totalorder %s24, 1
      %p89 = por %p87, %p88
      %p91 = scmp.ne.s32.totalorder %s76, %s90
      %p92 = scmp.eq.s32.totalorder %s24, 0
      %p93 = por %p91, %p92
      %s95 = sadd.s32 %s94, 1
      %p98 = scmp.eq.s32.totalorder %s18, 1
      %p99 = scmp.ne.s32.totalorder %s94, %s96
      %p100 = scmp.eq.s32.totalorder %s18, 0
      %p101 = por %p99, %p100
      %p102 = scmp.ne.s32.totalorder %s94, %s96
      %p103 = scmp.eq.s32.totalorder %s23, 1
      %p104 = por %p102, %p103
      %p105 = scmp.ne.s32.totalorder %s96, %s97
      %p106 = scmp.eq.s32.totalorder %s23, 0
      %p107 = por %p105, %p106
      %p108 = scmp.ne.s32.totalorder %s96, %s97
      %p109 = scmp.eq.s32.totalorder %s24, 1
      %p110 = por %p108, %p109
      %p112 = scmp.ne.s32.totalorder %s97, %s111
      %p113 = scmp.eq.s32.totalorder %s24, 0
      %p114 = por %p112, %p113
      %s116 = sadd.s32 %s115, 1
      %p119 = scmp.eq.s32.totalorder %s18, 1
      %p120 = scmp.ne.s32.totalorder %s115, %s117
      %p121 = scmp.eq.s32.totalorder %s18, 0
      %p122 = por %p120, %p121
      %p123 = scmp.ne.s32.totalorder %s115, %s117
      %p124 = scmp.eq.s32.totalorder %s23, 1
      %p125 = por %p123, %p124
      %p126 = scmp.ne.s32.totalorder %s117, %s118
      %p127 = scmp.eq.s32.totalorder %s23, 0
      %p128 = por %p126, %p127
      %p129 = scmp.ne.s32.totalorder %s117, %s118
      %p130 = scmp.eq.s32.totalorder %s24, 1
      %p131 = por %p129, %p130
      %p133 = scmp.ne.s32.totalorder %s118, %s132
      %p134 = scmp.eq.s32.totalorder %s24, 0
      %p135 = por %p133, %p134
      %s136 = ssub.s32 %s18, %s25
      %p137 = scmp.eq.s32.totalorder %s136, 0
      %s139 = sadd.s32 %s138, 1
      %s140 = scalar_select %p137, %s138, %s139
      %p143 = pneg %p137
      %p144 = scmp.eq.s32.totalorder %s18, 1
      %p145 = por %p143, %p144
      %p146 = scmp.ne.s32.totalorder %s138, %s141
      %p147 = scmp.eq.s32.totalorder %s18, 0
      %p148 = por %p146, %p147
      %p149 = scmp.ne.s32.totalorder %s138, %s141
      %p150 = scmp.eq.s32.totalorder %s23, 1
      %p151 = por %p149, %p150
      %p152 = scmp.ne.s32.totalorder %s141, %s142
      %p153 = scmp.eq.s32.totalorder %s23, 0
      %p154 = por %p152, %p153
      %p155 = scmp.ne.s32.totalorder %s141, %s142
      %p156 = scmp.eq.s32.totalorder %s24, 1
      %p157 = por %p155, %p156
      %p159 = scmp.ne.s32.totalorder %s142, %s158
      %p160 = scmp.eq.s32.totalorder %s24, 0
      %p161 = por %p159, %p160
      %p162 = scmp.le.s32.totalorder 1, %s18
      %p163 = scmp.lt.s32.totalorder %s18, 3
      %p164 = pnand %p162, %p163
      %p165 = pneg %p164
      // Predicated region
      $region9: #{tpu_custom_call.1} parent=5 // pred_check
        _
      $region10: #{tpu_custom_call.1} parent=5 // pred_check_branch
        %167 = sbr.rel (%p164) target = $region12
      $region11: #{tpu_custom_call.1} parent=5 // pred_region
        %s168 = ssub.s32 %s18, 1
        // Predicated region
        $region13: #{tpu_custom_call.1} parent=11 // pred_check
          %p169 = pneg %p65
        $region14: #{tpu_custom_call.1} parent=11 // pred_check_branch
          %171 = sbr.rel (%p169) target = $region16
        $region15: #{tpu_custom_call.1} parent=11 // pred_region
          %s173 = ssub.s32 2048, 2048
          %174 = vsyncadd [#allocation7], %s173
          %s175 = sshll.u32 [#allocation6], 4
          %s176 = int_to_ptr.vmem [resolvable:$true] %s175
          %181 = dma.hbm_to_vmem [thread:$0]  %s1, 2048, %s176, [#allocation7], 128, 128, 8
        $region16: #{tpu_custom_call.1} parent=11 // pred_fallthru
          _
        // Predicated region
        $region17: #{tpu_custom_call.1} parent=11 // pred_check
          %p182 = pneg %p86
        $region18: #{tpu_custom_call.1} parent=11 // pred_check_branch
          %184 = sbr.rel (%p182) target = $region20
        $region19: #{tpu_custom_call.1} parent=11 // pred_region
          _
        $region20: #{tpu_custom_call.1} parent=11 // pred_fallthru
          _
        // Predicated region
        $region21: #{tpu_custom_call.1} parent=11 // pred_check
          %p185 = pneg %p107
        $region22: #{tpu_custom_call.1} parent=11 // pred_check_branch
          %187 = sbr.rel (%p185) target = $region24
        $region23: #{tpu_custom_call.1} parent=11 // pred_region
          %s189 = ssub.s32 2048, 2048
          %190 = vsyncadd [#allocation7], %s189
          %s191 = sshll.u32 [#allocation8], 4
          %s192 = int_to_ptr.vmem [resolvable:$true] %s191
          %197 = dma.hbm_to_vmem [thread:$0]  %s3, 2048, %s192, [#allocation7], 128, 128, 8
        $region24: #{tpu_custom_call.1} parent=11 // pred_fallthru
          _
        // Predicated region
        $region25: #{tpu_custom_call.1} parent=11 // pred_check
          %p198 = pneg %p128
        $region26: #{tpu_custom_call.1} parent=11 // pred_check_branch
          %200 = sbr.rel (%p198) target = $region28
        $region27: #{tpu_custom_call.1} parent=11 // pred_region
          _
        $region28: #{tpu_custom_call.1} parent=11 // pred_fallthru
          _
      $region12: #{tpu_custom_call.1} parent=5 // pred_fallthru
        _
      %p201 = scmp.lt.s32.totalorder %s18, 2
      // Predicated region
      $region29: #{tpu_custom_call.1} parent=5 // pred_check
        %p202 = pneg %p201
      $region30: #{tpu_custom_call.1} parent=5 // pred_check_branch
        %204 = sbr.rel (%p202) target = $region32
      $region31: #{tpu_custom_call.1} parent=5 // pred_region
        // Predicated region
        $region33: #{tpu_custom_call.1} parent=31 // pred_check
          %p205 = pneg %p38
        $region34: #{tpu_custom_call.1} parent=31 // pred_check_branch
          %207 = sbr.rel (%p205) target = $region36
        $region35: #{tpu_custom_call.1} parent=31 // pred_region
          %s208 = sand.u32 %s28, 1
          %s209 = scalar_lea.sflag [#allocation4], %s208
          %s210 = sand.u32 %s28, 1
          %s211 = smul.addr %s210, 8
          %s212 = scalar_lea.vmem [#allocation3], %s211
          %s214 = ssub.s32 128, 128
          %215 = vsyncadd %s209, %s214
          %s216 = smul.addr %s18, 128
          %s217 = scalar_lea.hbm %s0, %s216
          %s219 = sshll.u32 %s212, 4
          %s220 = int_to_ptr.vmem [resolvable:$true] %s219
          %222 = dma.hbm_to_vmem [thread:$0]  %s217, 128, %s220, %s209
        $region36: #{tpu_custom_call.1} parent=31 // pred_fallthru
          _
      $region32: #{tpu_custom_call.1} parent=5 // pred_fallthru
        _
      %p223 = scmp.le.s32.totalorder 1, %s18
      %p224 = scmp.lt.s32.totalorder %s18, 3
      %p225 = pnand %p223, %p224
      %p226 = pneg %p225
      // Predicated region
      $region37: #{tpu_custom_call.1} parent=5 // pred_check
        _
      $region38: #{tpu_custom_call.1} parent=5 // pred_check_branch
        %228 = sbr.rel (%p225) target = $region40
      $region39: #{tpu_custom_call.1} parent=5 // pred_region
        %s229 = ssub.s32 %s18, 1
        %s230 = sand.u32 %s31, 1
        %s231 = scalar_lea.sflag [#allocation4], %s230
        %s232 = sand.u32 %s31, 1
        %s233 = smul.addr %s232, 8
        %s234 = scalar_lea.vmem [#allocation3], %s233
        // Predicated region
        $region41: #{tpu_custom_call.1} parent=39 // pred_check
          %p235 = pneg %p44
        $region42: #{tpu_custom_call.1} parent=39 // pred_check_branch
          %237 = sbr.rel (%p235) target = $region44
        $region43: #{tpu_custom_call.1} parent=39 // pred_region
          %238 = dma.done %s231, 128
        $region44: #{tpu_custom_call.1} parent=39 // pred_fallthru
          _
        // Predicated region
        $region45: #{tpu_custom_call.1} parent=39 // pred_check
          %p239 = pneg %p65
        $region46: #{tpu_custom_call.1} parent=39 // pred_check_branch
          %241 = sbr.rel (%p239) target = $region48
        $region47: #{tpu_custom_call.1} parent=39 // pred_region
          %242 = dma.done [#allocation7], 2048
        $region48: #{tpu_custom_call.1} parent=39 // pred_fallthru
          _
        // Predicated region
        $region49: #{tpu_custom_call.1} parent=39 // pred_check
          %p243 = pneg %p107
        $region50: #{tpu_custom_call.1} parent=39 // pred_check_branch
          %245 = sbr.rel (%p243) target = $region52
        $region51: #{tpu_custom_call.1} parent=39 // pred_region
          %246 = dma.done [#allocation7], 2048
        $region52: #{tpu_custom_call.1} parent=39 // pred_fallthru
          _
        %s247 = sand.u32 %s31, 1
        %s248 = scalar_lea.sflag [#allocation4], %s247
        %s249 = sand.u32 %s31, 1
        %s250 = smul.addr %s249, 8
        %s251 = scalar_lea.vmem [#allocation3], %s250
        %p252 = pneg %p44
        %p253 = pneg %p41
        %p254 = pneg %p65
        %p255 = pneg %p62
        %p256 = pneg %p86
        %p257 = pneg %p83
        %p258 = pneg %p107
        %p259 = pneg %p104
        %p260 = pneg %p128
        %p261 = pneg %p125
        %p262 = pneg %p154
        %p263 = pneg %p151
        %s264 = sand.u32 %s141, 1
        %s265 = scalar_lea.sflag [#allocation5], %s264
        %s266 = sand.u32 %s141, 1
        %s267 = smul.addr %s266, 8
        %s268 = scalar_lea.vmem [#allocation9], %s267
        %v269 = vld [vmem:[%s234] sm:$0xff]
        %v270 = vld [vmem:[#allocation6] sm:$0xff]
        %v271 = vld [vmem:[#allocation6 + $0x8] sm:$0xff]
        %v272 = vld [vmem:[#allocation6 + $0x10] sm:$0xff]
        %v273 = vld [vmem:[#allocation6 + $0x18] sm:$0xff]
        %v274 = vld [vmem:[#allocation6 + $0x20] sm:$0xff]
        %v275 = vld [vmem:[#allocation6 + $0x28] sm:$0xff]
        %v276 = vld [vmem:[#allocation6 + $0x30] sm:$0xff]
        %v277 = vld [vmem:[#allocation6 + $0x38] sm:$0xff]
        %v278 = vld [vmem:[#allocation6 + $0x40] sm:$0xff]
        %v279 = vld [vmem:[#allocation6 + $0x48] sm:$0xff]
        %v280 = vld [vmem:[#allocation6 + $0x50] sm:$0xff]
        %v281 = vld [vmem:[#allocation6 + $0x58] sm:$0xff]
        %v282 = vld [vmem:[#allocation6 + $0x60] sm:$0xff]
        %v283 = vld [vmem:[#allocation6 + $0x68] sm:$0xff]
        %v284 = vld [vmem:[#allocation6 + $0x70] sm:$0xff]
        %v285 = vld [vmem:[#allocation6 + $0x78] sm:$0xff]
        %v286 = vld [vmem:[%s2] sm:$0x1]
        %v288 = vlaneseq
        %v289 = vshrl.u32 %v288, 7
        %v290 = vsub.s32 0, %v289
        %v291 = vrot.slane %v286, %v290
        %293 = vmatprep.subr.mxu0 0.0
        %294 = vmatpush1.msra.mxu0 %v285
        %295 = vmatprep.subr.mxu0 0.0
        %296 = vmatpush1.msra.mxu0 %v284
        %297 = vmatprep.subr.mxu0 0.0
        %298 = vmatpush1.msra.mxu0 %v283
        %299 = vmatprep.subr.mxu0 0.0
        %300 = vmatpush1.msra.mxu0 %v282
        %301 = vmatprep.subr.mxu0 0.0
        %302 = vmatpush1.msra.mxu0 %v281
        %303 = vmatprep.subr.mxu0 0.0
        %304 = vmatpush1.msra.mxu0 %v280
        %305 = vmatprep.subr.mxu0 0.0
        %306 = vmatpush1.msra.mxu0 %v279
        %307 = vmatprep.subr.mxu0 0.0
        %308 = vmatpush1.msra.mxu0 %v278
        %309 = vmatprep.subr.mxu0 0.0
        %310 = vmatpush1.msra.mxu0 %v277
        %311 = vmatprep.subr.mxu0 0.0
        %312 = vmatpush1.msra.mxu0 %v276
        %313 = vmatprep.subr.mxu0 0.0
        %314 = vmatpush1.msra.mxu0 %v275
        %315 = vmatprep.subr.mxu0 0.0
        %316 = vmatpush1.msra.mxu0 %v274
        %317 = vmatprep.subr.mxu0 0.0
        %318 = vmatpush1.msra.mxu0 %v273
        %319 = vmatprep.subr.mxu0 0.0
        %320 = vmatpush1.msra.mxu0 %v272
        %321 = vmatprep.subr.mxu0 0.0
        %322 = vmatpush1.msra.mxu0 %v271
        %323 = vmatprep.subr.mxu0 0.0
        %324 = vmatpush1.msra.mxu0 %v270
        %325 = vmatprep.subr.mxu0 0.0
        %326 = vmatpush2.msra.mxu0 0.0
        %327 = vmatprep.subr.mxu0 0.0
        %328 = vmatpush2.msra.mxu0 0.0
        %329 = vmatprep.subr.mxu0 0.0
        %330 = vmatpush2.msra.mxu0 0.0
        %331 = vmatprep.subr.mxu0 0.0
        %332 = vmatpush2.msra.mxu0 0.0
        %333 = vmatprep.subr.mxu0 0.0
        %334 = vmatpush2.msra.mxu0 0.0
        %335 = vmatprep.subr.mxu0 0.0
        %336 = vmatpush2.msra.mxu0 0.0
        %337 = vmatprep.subr.mxu0 0.0
        %338 = vmatpush2.msra.mxu0 0.0
        %339 = vmatprep.subr.mxu0 0.0
        %340 = vmatpush2.msra.mxu0 0.0
        %341 = vmatprep.subr.mxu0 0.0
        %342 = vmatpush2.msra.mxu0 0.0
        %343 = vmatprep.subr.mxu0 0.0
        %344 = vmatpush2.msra.mxu0 0.0
        %345 = vmatprep.subr.mxu0 0.0
        %346 = vmatpush2.msra.mxu0 0.0
        %347 = vmatprep.subr.mxu0 0.0
        %348 = vmatpush2.msra.mxu0 0.0
        %349 = vmatprep.subr.mxu0 0.0
        %350 = vmatpush2.msra.mxu0 0.0
        %351 = vmatprep.subr.mxu0 0.0
        %352 = vmatpush2.msra.mxu0 0.0
        %353 = vmatprep.subr.mxu0 0.0
        %354 = vmatpush2.msra.mxu0 0.0
        %355 = vmatprep.subr.mxu0 0.0
        %356 = vmatpush2.msra.mxu0 0.0
        %357 = vmatprep.mubr.f32.mxu0 0.0
        %358 = vmatmul.mubr.f32.gmra.mxu0 %v269
        %v359 = vpop.f32.mrf.mxu0
        %v360 = vadd.f32 %v291, %v359
        %v361 = vpop.f32.mrf.mxu0
        %362 = vdwg.mxu0
        %v363 = vmul.f32 %v360, %v360
        %v364 = vmul.f32 %v360, %v363
        %v365 = vmul.f32 %v364, 0.044715
        %v366 = vadd.f32 %v360, %v365
        %v367 = vmul.f32 %v366, 0.7978846
        %v368 = vtanh.pop %v367
        %v369 = vadd.f32 %v368, 1.0
        %v370 = vmul.f32 %v369, 0.5
        %v371 = vmul.f32 %v360, %v370
        %v372 = vld [vmem:[#allocation8] sm:$0xff]
        %v373 = vld [vmem:[#allocation8 + $0x8] sm:$0xff]
        %v374 = vld [vmem:[#allocation8 + $0x10] sm:$0xff]
        %v375 = vld [vmem:[#allocation8 + $0x18] sm:$0xff]
        %v376 = vld [vmem:[#allocation8 + $0x20] sm:$0xff]
        %v377 = vld [vmem:[#allocation8 + $0x28] sm:$0xff]
        %v378 = vld [vmem:[#allocation8 + $0x30] sm:$0xff]
        %v379 = vld [vmem:[#allocation8 + $0x38] sm:$0xff]
        %v380 = vld [vmem:[#allocation8 + $0x40] sm:$0xff]
        %v381 = vld [vmem:[#allocation8 + $0x48] sm:$0xff]
        %v382 = vld [vmem:[#allocation8 + $0x50] sm:$0xff]
        %v383 = vld [vmem:[#allocation8 + $0x58] sm:$0xff]
        %v384 = vld [vmem:[#allocation8 + $0x60] sm:$0xff]
        %v385 = vld [vmem:[#allocation8 + $0x68] sm:$0xff]
        %v386 = vld [vmem:[#allocation8 + $0x70] sm:$0xff]
        %v387 = vld [vmem:[#allocation8 + $0x78] sm:$0xff]
        %388 = vmatprep.subr.mxu0 0.0
        %389 = vmatpush1.msra.mxu0 %v387
        %390 = vmatprep.subr.mxu0 0.0
        %391 = vmatpush1.msra.mxu0 %v386
        %392 = vmatprep.subr.mxu0 0.0
        %393 = vmatpush1.msra.mxu0 %v385
        %394 = vmatprep.subr.mxu0 0.0
        %395 = vmatpush1.msra.mxu0 %v384
        %396 = vmatprep.subr.mxu0 0.0
        %397 = vmatpush1.msra.mxu0 %v383
        %398 = vmatprep.subr.mxu0 0.0
        %399 = vmatpush1.msra.mxu0 %v382
        %400 = vmatprep.subr.mxu0 0.0
        %401 = vmatpush1.msra.mxu0 %v381
        %402 = vmatprep.subr.mxu0 0.0
        %403 = vmatpush1.msra.mxu0 %v380
        %404 = vmatprep.subr.mxu0 0.0
        %405 = vmatpush1.msra.mxu0 %v379
        %406 = vmatprep.subr.mxu0 0.0
        %407 = vmatpush1.msra.mxu0 %v378
        %408 = vmatprep.subr.mxu0 0.0
        %409 = vmatpush1.msra.mxu0 %v377
        %410 = vmatprep.subr.mxu0 0.0
        %411 = vmatpush1.msra.mxu0 %v376
        %412 = vmatprep.subr.mxu0 0.0
        %413 = vmatpush1.msra.mxu0 %v375
        %414 = vmatprep.subr.mxu0 0.0
        %415 = vmatpush1.msra.mxu0 %v374
        %416 = vmatprep.subr.mxu0 0.0
        %417 = vmatpush1.msra.mxu0 %v373
        %418 = vmatprep.subr.mxu0 0.0
        %419 = vmatpush1.msra.mxu0 %v372
        %420 = vmatprep.subr.mxu0 0.0
        %421 = vmatpush2.msra.mxu0 0.0
        %422 = vmatprep.subr.mxu0 0.0
        %423 = vmatpush2.msra.mxu0 0.0
        %424 = vmatprep.subr.mxu0 0.0
        %425 = vmatpush2.msra.mxu0 0.0
        %426 = vmatprep.subr.mxu0 0.0
        %427 = vmatpush2.msra.mxu0 0.0
        %428 = vmatprep.subr.mxu0 0.0
        %429 = vmatpush2.msra.mxu0 0.0
        %430 = vmatprep.subr.mxu0 0.0
        %431 = vmatpush2.msra.mxu0 0.0
        %432 = vmatprep.subr.mxu0 0.0
        %433 = vmatpush2.msra.mxu0 0.0
        %434 = vmatprep.subr.mxu0 0.0
        %435 = vmatpush2.msra.mxu0 0.0
        %436 = vmatprep.subr.mxu0 0.0
        %437 = vmatpush2.msra.mxu0 0.0
        %438 = vmatprep.subr.mxu0 0.0
        %439 = vmatpush2.msra.mxu0 0.0
        %440 = vmatprep.subr.mxu0 0.0
        %441 = vmatpush2.msra.mxu0 0.0
        %442 = vmatprep.subr.mxu0 0.0
        %443 = vmatpush2.msra.mxu0 0.0
        %444 = vmatprep.subr.mxu0 0.0
        %445 = vmatpush2.msra.mxu0 0.0
        %446 = vmatprep.subr.mxu0 0.0
        %447 = vmatpush2.msra.mxu0 0.0
        %448 = vmatprep.subr.mxu0 0.0
        %449 = vmatpush2.msra.mxu0 0.0
        %450 = vmatprep.subr.mxu0 0.0
        %451 = vmatpush2.msra.mxu0 0.0
        %452 = vmatprep.mubr.f32.mxu0 0.0
        %453 = vmatmul.mubr.f32.gmra.mxu0 %v371
        %v454 = vpop.f32.mrf.mxu0
        %v455 = vadd.f32 0.0, %v454
        %v456 = vpop.f32.mrf.mxu0
        %457 = vdwg.mxu0
        %458 = vst [vmem:[#allocation2] sm:$0xff] %v455
        %v459 = vld [vmem:[#allocation2] sm:$0xff]
        %v460 = vld [vmem:[%s4] sm:$0x1]
        %v462 = vlaneseq
        %v463 = vshrl.u32 %v462, 7
        %v464 = vsub.s32 0, %v463
        %v465 = vrot.slane %v460, %v464
        %v467 = vadd.f32 %v459, %v465
        %v468 = vld [vmem:[%s234] sm:$0xff]
        %v469 = vadd.f32 %v467, %v468
        %470 = vst [vmem:[%s268] sm:$0xff] %v469
        %s471 = sand.u32 %s141, 1
        %s472 = scalar_lea.sflag [#allocation5], %s471
        %s473 = sand.u32 %s141, 1
        %s474 = smul.addr %s473, 8
        %s475 = scalar_lea.vmem [#allocation9], %s474
        // Predicated region
        $region53: #{tpu_custom_call.1} parent=39 // pred_check
          %p476 = pneg %p151
        $region54: #{tpu_custom_call.1} parent=39 // pred_check_branch
          %478 = sbr.rel (%p476) target = $region56
        $region55: #{tpu_custom_call.1} parent=39 // pred_region
          %s480 = ssub.s32 128, 128
          %481 = vsyncadd %s472, %s480
          %s482 = smul.addr %s23, 128
          %s483 = scalar_lea.hbm %s5, %s482
          %s485 = sshll.u32 %s475, 4
          %s486 = int_to_ptr.vmem [resolvable:$true] %s485
          %488 = dma.vmem_to_hbm [thread:$0]  %s486, 128, %s483, %s472
        $region56: #{tpu_custom_call.1} parent=39 // pred_fallthru
          _
      $region40: #{tpu_custom_call.1} parent=5 // pred_fallthru
        _
      %p489 = scmp.le.s32.totalorder 2, %s18
      // Predicated region
      $region57: #{tpu_custom_call.1} parent=5 // pred_check
        %p490 = pneg %p489
      $region58: #{tpu_custom_call.1} parent=5 // pred_check_branch
        %492 = sbr.rel (%p490) target = $region60
      $region59: #{tpu_custom_call.1} parent=5 // pred_region
        %s493 = ssub.s32 %s18, 2
        // Predicated region
        $region61: #{tpu_custom_call.1} parent=59 // pred_check
          %p494 = pneg %p157
        $region62: #{tpu_custom_call.1} parent=59 // pred_check_branch
          %496 = sbr.rel (%p494) target = $region64
        $region63: #{tpu_custom_call.1} parent=59 // pred_region
          %s497 = sand.u32 %s142, 1
          %s498 = scalar_lea.sflag [#allocation5], %s497
          %s499 = sand.u32 %s142, 1
          %s500 = smul.addr %s499, 8
          %s501 = scalar_lea.vmem [#allocation9], %s500
          %502 = dma.done %s498, 128
        $region64: #{tpu_custom_call.1} parent=59 // pred_fallthru
          _
      $region60: #{tpu_custom_call.1} parent=5 // pred_fallthru
        _
    $region6: #{tpu_custom_call.1} parent=1 // loop_footer
      %s22 = sadd.s32 1, %s18
    $region7: #{tpu_custom_call.1} parent=1 // loop_footer_branch
      %17 = sbr.rel target = $region3
    $region8: #{tpu_custom_call.1} parent=1 // loop_exit
      _
    %503 = vsyncpa [#allocation4], 1
    %s504 = scalar_lea.sflag [#allocation4], 1
    %505 = vsyncpa %s504, 1
    %506 = vsyncpa [#allocation7], 1
    %507 = vsyncpa [#allocation5], 1
    %s508 = scalar_lea.sflag [#allocation5], 1
    %509 = vsyncpa %s508, 1

</llo_original>
